<compile_context>
chip_gen: v7x
topology: tpu7x:2x2x1
jax: 0.10.0
libtpu: 0.0.40
codegen_flags: <defaults>
</compile_context>

<pallas_src>
import functools

import jax
import jax.numpy as jnp
from jax.experimental import pallas as pl
from jax.experimental.pallas import tpu as pltpu

EMB_DIM = 32          # emb_dim (small for the demo; module default is 300)
NUM_LAYERS = 3        # num_layers
BN_EPS = 1e-5         # torch.nn.BatchNorm1d default eps
LANE = 128            # lane-aligned feature padding (matches v5e's 128x128 MXU tile)


def _rup(n, m):
    return ((n + m - 1) // m) * m


def _pad2(x, r, c):
    return jnp.pad(x, ((0, r - x.shape[0]), (0, c - x.shape[1])))


# ----------------------------- in-kernel helpers -----------------------------

def _bf16_dot(h, w_ref):
    # MXU-native bf16 operands, f32 accumulate.
    return jnp.dot(h.astype(jnp.bfloat16), w_ref[...], preferred_element_type=jnp.float32)


def _row_mask(rows, n_real):
    # n_real is a static Python int -> this folds to a constant mask at trace time.
    return (jax.lax.broadcasted_iota(jnp.int32, (rows, 1), 0) < n_real).astype(jnp.float32)


def _bn_relu(y, g_ref, beta_ref, rmask, inv_n):
    # Training-mode BatchNorm1d (biased var over the real rows) + ReLU, all f32 on the VPU.
    mean = jnp.sum(y * rmask, axis=0, keepdims=True) * inv_n
    cent = (y - mean) * rmask
    var = jnp.sum(cent * cent, axis=0, keepdims=True) * inv_n
    yhat = (y - mean) * jax.lax.rsqrt(var + BN_EPS)
    return jnp.maximum(yhat * g_ref[...] + beta_ref[...], 0.0)


# ----------------------------- Pallas kernels (3 total) -----------------------------

def _sage_stack_kernel(*refs, num_layers):
    # refs: x, A_mean[npad,npad], P_parent[gpad,npad], [wl, bl, wr] * num_layers, out[gpad,LANE]
    x_ref, a_ref, p_ref = refs[0], refs[1], refs[2]
    o_ref = refs[-1]
    params = refs[3:-1]
    h = x_ref[...]
    for i in range(num_layers):
        wl, bl, wr = params[3 * i], params[3 * i + 1], params[3 * i + 2]
        # SAGEConv (mean agg, inv_deg folded into A): h' = A@h @ Wl + bl + h @ Wr
        agg = jnp.dot(a_ref[...], h, preferred_element_type=jnp.float32)
        h = _bf16_dot(agg, wl) + _bf16_dot(h, wr) + bl[...]
        if i != num_layers - 1:
            h = jnp.maximum(h, 0.0)
            # TODO(synk): F.dropout(p=0.5, training=True) is stochastic; omitted for determinism.
    # global_add_pool per subgraph then sum over subgraphs == sum over all of the parent graph's
    # sub-nodes, so P maps nodes straight to parent-graph rows.
    o_ref[...] = jnp.dot(p_ref[...], h, preferred_element_type=jnp.float32)


def _gin_stack_kernel(*refs, num_layers, n_nodes, num_graphs):
    # refs: x, A[npad,npad], P[gpad,npad], Pt[npad,gpad], enc_w, enc_b,
    #       [w1, b1, g1, be1, w2, b2] * num_layers, [wv, bv, gv, bev] * (num_layers-1), out
    x_ref, a_ref, p_ref, pt_ref = refs[0], refs[1], refs[2], refs[3]
    o_ref = refs[-1]
    params = refs[4:-1]
    npad = x_ref.shape[0]
    gpad = p_ref.shape[0]
    nmask = _row_mask(npad, n_nodes)
    gmask = _row_mask(gpad, num_graphs)
    inv_n = 1.0 / float(n_nodes)
    inv_g = 1.0 / float(num_graphs)

    enc_w, enc_b = params[0], params[1]
    conv = params[2:2 + 6 * num_layers]
    vnp = params[2 + 6 * num_layers:]

    # TODO(synk): the exact OGB `GNN` (AtomEncoder/BondEncoder lookups, per-layer post-MLP
    # BatchNorm) source was not provided; this is a simplified GIN-with-virtual-node
    # (gnn_type='gin', virtual_node=True, residual=False, JK='last', sum pooling).
    h = _bf16_dot(x_ref[...], enc_w) + enc_b[...]                       # node encoder
    vn = jnp.zeros((gpad, LANE), jnp.float32)                           # virtual node init to 0
    for i in range(num_layers):
        w1, b1, g1, be1, w2, b2 = conv[6 * i:6 * i + 6]
        hv = h + jnp.dot(pt_ref[...], vn, preferred_element_type=jnp.float32)   # vn[batch]
        agg = jnp.dot(a_ref[...], hv, preferred_element_type=jnp.float32)
        z = hv + agg                                                    # GIN update, eps = 0
        t = _bn_relu(_bf16_dot(z, w1) + b1[...], g1, be1, nmask, inv_n)
        h = _bf16_dot(t, w2) + b2[...]
        if i != num_layers - 1:
            h = jnp.maximum(h, 0.0)
            wv, bv, gv, bev = vnp[4 * i:4 * i + 4]
            pooled = jnp.dot(p_ref[...], h, preferred_element_type=jnp.float32) + vn
            vn = _bn_relu(_bf16_dot(pooled, wv) + bv[...], gv, bev, gmask, inv_g)
    o_ref[...] = jnp.dot(p_ref[...], h, preferred_element_type=jnp.float32)     # sum pooling


def _head_kernel(*refs, num_mlp_layers, num_graphs):
    # refs: x_gin, mol_attr, x_sub_pooled,
    #       mol [w,b,g,be]*L, sub [w,b,g,be]*L,
    #       last layer0 (w0a, w0b, w0c, b0, g0, be0), last [w,b,g,be]*(L-1), final (wf, bf), out
    xg_ref, xm_ref, xs_ref = refs[0], refs[1], refs[2]
    o_ref = refs[-1]
    params = refs[3:-1]
    gpad = xg_ref.shape[0]
    gmask = _row_mask(gpad, num_graphs)
    inv_g = 1.0 / float(num_graphs)

    L = num_mlp_layers
    mol_p = params[0:4 * L]
    sub_p = params[4 * L:8 * L]
    rest = params[8 * L:]
    w0a, w0b, w0c, b0, g0, be0 = rest[0:6]
    last_p = rest[6:6 + 4 * (L - 1)]
    wf, bf = rest[6 + 4 * (L - 1):]

    def run_mlp(x, plist):
        h = x
        for i in range(L):
            w, b, g, be = plist[4 * i:4 * i + 4]
            h = _bn_relu(_bf16_dot(h, w) + b[...], g, be, gmask, inv_g)   # Dropout(p=0) = identity
        return h

    x_mol = run_mlp(xm_ref[...], mol_p)
    x_sub = run_mlp(xs_ref[...], sub_p)

    # last_mlp first layer: concat([x_gin, x_mol, x_sub], 1) @ W == sum of three block matmuls.
    y0 = (_bf16_dot(xg_ref[...], w0a) + _bf16_dot(x_mol, w0b)
          + _bf16_dot(x_sub, w0c) + b0[...])
    h = _bn_relu(y0, g0, be0, gmask, inv_g)
    for i in range(L - 1):
        w, b, g, be = last_p[4 * i:4 * i + 4]
        h = _bn_relu(_bf16_dot(h, w) + b[...], g, be, gmask, inv_g)
    out = _bf16_dot(h, wf) + bf[...]
    o_ref[...] = jnp.clip(out, 0.0, 50.0)          # torch.clamp(out, min=0, max=50)


def _single_block_call(kernel, out_rows, *inputs):
    # Grid-less single-block call: everything trivially fits VMEM at these sizes.
    return pl.pallas_call(
        kernel,
        out_shape=jax.ShapeDtypeStruct((out_rows, LANE), jnp.float32),
        in_specs=[pl.BlockSpec(memory_space=pltpu.MemorySpace.VMEM)] * len(inputs),
        out_specs=pl.BlockSpec(memory_space=pltpu.MemorySpace.VMEM),
    )(*inputs)


# ----------------------------- parameter init (pre-padded, bf16 weights) -----------------------

def _rand_linear(key, k, m, scale=0.1):
    kw, kb = jax.random.split(key)
    w = scale * jax.random.normal(kw, (k, m), jnp.float32)
    b = scale * jax.random.normal(kb, (m,), jnp.float32)
    return w, b


def _pad_w(w):
    return _pad2(w, LANE, LANE).astype(jnp.bfloat16)       # MXU operand


def _pad_row(v):
    return _pad2(v.reshape(1, -1), 1, LANE)                # bias / gamma / beta stay f32


def init_mlp(key, input_dim, num_mlp_layers, emb_dim, multi_model, input_block_dims=None):
    # MLP = num_mlp_layers x [Linear, BatchNorm1d, ReLU, Dropout(p=0)] (+ Linear(emb,1) if not multi_model)
    keys = jax.random.split(key, num_mlp_layers + 1)
    dims = [input_dim] + [emb_dim] * num_mlp_layers
    flat = []
    for i in range(num_mlp_layers):
        w, b = _rand_linear(keys[i], dims[i], dims[i + 1])
        if i == 0 and input_block_dims is not None:
            # First-layer input arrives as separate LANE-padded blocks; split W rows to match.
            off = 0
            for bd in input_block_dims:
                flat.append(_pad_w(w[off:off + bd]))
                off += bd
        else:
            flat.append(_pad_w(w))
        flat.append(_pad_row(b))
        flat.append(_pad_row(jnp.ones((dims[i + 1],), jnp.float32)))   # gamma (padded lanes -> 0)
        flat.append(jnp.zeros((1, LANE), jnp.float32))                 # beta
    if not multi_model:
        wf, bf = _rand_linear(keys[-1], emb_dim, 1)
        flat += [_pad_w(wf), _pad_row(bf)]
    return flat


def init_sage(key, in_channels, hidden, num_layers):
    flat = []
    keys = jax.random.split(key, num_layers)
    for i in range(num_layers):
        ic = in_channels if i == 0 else hidden
        k1, k2 = jax.random.split(keys[i])
        wl, bl = _rand_linear(k1, ic, hidden)      # lin_l (aggregated neighbors, with bias)
        wr, _ = _rand_linear(k2, ic, hidden)       # lin_r (root, no bias)
        flat += [_pad_w(wl), _pad_row(bl), _pad_w(wr)]
    return flat


def init_gin(key, in_dim, emb_dim, num_layers):
    keys = jax.random.split(key, 3 * num_layers + 1)
    w, b = _rand_linear(keys[0], in_dim, emb_dim)
    enc = [_pad_w(w), _pad_row(b)]                 # node encoder
    conv, vnp = [], []
    for i in range(num_layers):
        w1, b1 = _rand_linear(keys[3 * i + 1], emb_dim, 2 * emb_dim)
        w2, b2 = _rand_linear(keys[3 * i + 2], 2 * emb_dim, emb_dim)
        conv += [_pad_w(w1), _pad_row(b1),
                 _pad_row(jnp.ones((2 * emb_dim,), jnp.float32)), jnp.zeros((1, LANE), jnp.float32),
                 _pad_w(w2), _pad_row(b2)]
        if i < num_layers - 1:
            wv, bv = _rand_linear(keys[3 * i + 3], emb_dim, emb_dim)
            vnp += [_pad_w(wv), _pad_row(bv),
                    _pad_row(jnp.ones((emb_dim,), jnp.float32)), jnp.zeros((1, LANE), jnp.float32)]
    return enc + conv + vnp


# ----------------------------- dense graph operators (built once in JAX) -----------------------

def dense_adjacency(edge_index, npad, mean_normalize):
    # A[i, j] = #edges (src=j -> dst=i); optionally divide rows by in-degree (SAGE mean agg).
    src, dst = edge_index[0], edge_index[1]
    a = jnp.zeros((npad, npad), jnp.float32).at[dst, src].add(1.0)
    if mean_normalize:
        deg = jnp.sum(a, axis=1, keepdims=True)
        a = a / jnp.maximum(deg, 1.0)
    return a


def pooling_matrix(batch, n_nodes, gpad, npad):
    # P[g, n] = 1 if node n is real and batch[n] == g; padded rows/cols are all zero.
    batch_pad = jnp.pad(batch.astype(jnp.int32), (0, npad - batch.shape[0]))
    valid = (jnp.arange(npad) < n_nodes)[None, :]
    seg = jnp.arange(gpad)[:, None]
    return ((batch_pad[None, :] == seg) & valid).astype(jnp.float32)


# ----------------------------- MultipleModel forward -----------------------------

def sage_forward(sage_params, x, edge_index, parent_ids, gpad):
    n_nodes = x.shape[0]
    npad = _rup(max(n_nodes, 8), 8)
    x_pad = _pad2(x, npad, LANE)
    a = dense_adjacency(edge_index, npad, mean_normalize=True)
    p = pooling_matrix(parent_ids, n_nodes, gpad, npad)
    kern = functools.partial(_sage_stack_kernel, num_layers=NUM_LAYERS)
    return _single_block_call(kern, gpad, x_pad, a, p, *sage_params)


def gin_forward(gin_params, x, edge_index, batch, num_graphs, gpad):
    n_nodes = x.shape[0]
    npad = _rup(max(n_nodes, 8), 8)
    x_pad = _pad2(x, npad, LANE)
    a = dense_adjacency(edge_index, npad, mean_normalize=False)
    p = pooling_matrix(batch, n_nodes, gpad, npad)
    kern = functools.partial(_gin_stack_kernel, num_layers=NUM_LAYERS,
                             n_nodes=n_nodes, num_graphs=num_graphs)
    return _single_block_call(kern, gpad, x_pad, a, p, p.T, *gin_params)


def head_forward(mol_params, sub_params, last_params, x_gin, mol_attr, x_sub_pooled,
                 num_graphs, gpad):
    mol_pad = _pad2(mol_attr.reshape(-1, 35), gpad, LANE)
    kern = functools.partial(_head_kernel, num_mlp_layers=NUM_LAYERS, num_graphs=num_graphs)
    out = _single_block_call(kern, gpad, x_gin, mol_pad, x_sub_pooled,
                             *mol_params, *sub_params, *last_params)
    return out[:num_graphs, :1]                 # only slice at the very end


def multiple_model_forward(params, batched_data, sub_batched_data):
    num_graphs = batched_data["num_graphs"]
    gpad = _rup(max(num_graphs, 8), 8)

    # Batch every real sub-graph batch into ONE block-diagonal SAGE pass (a single pallas_call).
    xs, edges, parents, off = [], [], [], 0
    for parent_id, sub in enumerate(sub_batched_data):
        if sub is None:
            # TODO(synk): original hard-codes a (1, 200) zero `empty_subgraph` regardless of
            # emb_dim (shape bug for emb_dim != 200); here the empty parent simply gets a zero row.
            continue
        n = sub["x"].shape[0]
        xs.append(sub["x"])
        edges.append(sub["edge_index"] + off)
        parents.append(jnp.full((n,), parent_id, jnp.int32))
        off += n
    if xs:
        x_sub_nodes = jnp.concatenate(xs, axis=0)
        sub_edges = jnp.concatenate(edges, axis=1).astype(jnp.int32)
        sub_parent = jnp.concatenate(parents, axis=0)
        x_sub_pooled = sage_forward(params["sage"], x_sub_nodes, sub_edges, sub_parent, gpad)
    else:
        x_sub_pooled = jnp.zeros((gpad, LANE), jnp.float32)

    x_gin = gin_forward(params["gin"], batched_data["x"], batched_data["edge_index"],
                        batched_data["batch"], num_graphs, gpad)

    return head_forward(params["mol_mlp"], params["sub_mlp"], params["last_mlp"],
                        x_gin, batched_data["mol_attr"], x_sub_pooled, num_graphs, gpad)


if __name__ == "__main__":
    key = jax.random.PRNGKey(0)
    ks = jax.random.split(key, 12)

    params = {
        "sage": init_sage(ks[0], 9, EMB_DIM, NUM_LAYERS),                        # SAGE(in=9, hidden=emb)
        "gin": init_gin(ks[1], 9, EMB_DIM, NUM_LAYERS),                          # GNN(..., multi_model=True)
        "mol_mlp": init_mlp(ks[2], 35, NUM_LAYERS, EMB_DIM, multi_model=True),
        "sub_mlp": init_mlp(ks[3], EMB_DIM, NUM_LAYERS, EMB_DIM, multi_model=True),
        "last_mlp": init_mlp(ks[4], EMB_DIM * 3, NUM_LAYERS, EMB_DIM, multi_model=False,
                             input_block_dims=(EMB_DIM, EMB_DIM, EMB_DIM)),
    }

    # Main batched graph: 2 graphs (6 + 5 nodes), 9-dim node features, per-graph mol_attr (2, 35).
    num_graphs = 2
    n_nodes = 11
    x_node = jax.random.normal(ks[5], (n_nodes, 9), jnp.float32)
    e1 = jax.random.randint(ks[6], (2, 14), 0, 6)       # edges inside graph 0 (nodes 0..5)
    e2 = jax.random.randint(ks[7], (2, 10), 6, 11)      # edges inside graph 1 (nodes 6..10)
    batched_data = {
        "x": x_node,
        "edge_index": jnp.concatenate([e1, e2], axis=1).astype(jnp.int32),
        "batch": jnp.array([0] * 6 + [1] * 5, jnp.int32),
        "num_graphs": num_graphs,
        "mol_attr": jax.random.normal(ks[8], (num_graphs, 35), jnp.float32),
    }

    # Sub-batches: graph 0 has a real subgraph batch (2 subgraphs, 4 + 3 nodes); graph 1 is empty.
    sub0 = {
        "x": jax.random.normal(ks[9], (7, 9), jnp.float32),
        "edge_index": jnp.concatenate(
            [jax.random.randint(ks[10], (2, 8), 0, 4),
             jax.random.randint(ks[11], (2, 6), 4, 7)], axis=1).astype(jnp.int32),
    }
    sub_batched_data = [sub0, None]

    out = multiple_model_forward(params, batched_data, sub_batched_data)
    out = jax.block_until_ready(out)
    assert out.shape == (2, 1) and out.dtype == jnp.float32
    assert bool(jnp.all(out >= 0.0)) and bool(jnp.all(out <= 50.0))
    print("KERNEL_OK")
</pallas_src>

<mosaic_0001>
module attributes {stable_mosaic.version = 11 : i64} {
  func.func @_sage_stack_kernel(%arg0: memref<8x128xf32, #tpu.memory_space<vmem>>, %arg1: memref<8x8xf32, #tpu.memory_space<vmem>>, %arg2: memref<8x8xf32, #tpu.memory_space<vmem>>, %arg3: memref<128x128xbf16, #tpu.memory_space<vmem>>, %arg4: memref<1x128xf32, #tpu.memory_space<vmem>>, %arg5: memref<128x128xbf16, #tpu.memory_space<vmem>>, %arg6: memref<128x128xbf16, #tpu.memory_space<vmem>>, %arg7: memref<1x128xf32, #tpu.memory_space<vmem>>, %arg8: memref<128x128xbf16, #tpu.memory_space<vmem>>, %arg9: memref<128x128xbf16, #tpu.memory_space<vmem>>, %arg10: memref<1x128xf32, #tpu.memory_space<vmem>>, %arg11: memref<128x128xbf16, #tpu.memory_space<vmem>>, %arg12: memref<8x128xf32, #tpu.memory_space<vmem>>) attributes {dimension_semantics = [], scalar_prefetch = 0 : i64, scratch_operands = 0 : i64, tpu.core_type = #tpu.core_type<tc>} {
    %c0 = arith.constant 0 : index
    %c0_0 = arith.constant 0 : index
    %0 = vector.load %arg0[%c0, %c0_0] : memref<8x128xf32, #tpu.memory_space<vmem>>, vector<8x128xf32>
    %c0_1 = arith.constant 0 : index
    %c0_2 = arith.constant 0 : index
    %1 = vector.load %arg1[%c0_1, %c0_2] : memref<8x8xf32, #tpu.memory_space<vmem>>, vector<8x8xf32>
    %cst = arith.constant dense<0.000000e+00> : vector<8x128xf32>
    %2 = tpu.matmul %1, %0, %cst {dimension_numbers = #tpu.dot_dimension_numbers<[1], [0], [0], [1], [0, 0, 1, 1], [], []>} : vector<8x8xf32>, vector<8x128xf32>, vector<8x128xf32> -> vector<8x128xf32>
    %3 = arith.truncf %2 : vector<8x128xf32> to vector<8x128xbf16>
    %c0_3 = arith.constant 0 : index
    %c0_4 = arith.constant 0 : index
    %4 = vector.load %arg3[%c0_3, %c0_4] : memref<128x128xbf16, #tpu.memory_space<vmem>>, vector<128x128xbf16>
    %cst_5 = arith.constant dense<0.000000e+00> : vector<8x128xf32>
    %5 = tpu.matmul %3, %4, %cst_5 {dimension_numbers = #tpu.dot_dimension_numbers<[1], [0], [0], [1], [0, 0, 1, 1], [], []>} : vector<8x128xbf16>, vector<128x128xbf16>, vector<8x128xf32> -> vector<8x128xf32>
    %6 = arith.truncf %0 : vector<8x128xf32> to vector<8x128xbf16>
    %c0_6 = arith.constant 0 : index
    %c0_7 = arith.constant 0 : index
    %7 = vector.load %arg5[%c0_6, %c0_7] : memref<128x128xbf16, #tpu.memory_space<vmem>>, vector<128x128xbf16>
    %cst_8 = arith.constant dense<0.000000e+00> : vector<8x128xf32>
    %8 = tpu.matmul %6, %7, %cst_8 {dimension_numbers = #tpu.dot_dimension_numbers<[1], [0], [0], [1], [0, 0, 1, 1], [], []>} : vector<8x128xbf16>, vector<128x128xbf16>, vector<8x128xf32> -> vector<8x128xf32>
    %9 = arith.addf %5, %8 : vector<8x128xf32>
    %c0_9 = arith.constant 0 : index
    %c0_10 = arith.constant 0 : index
    %10 = vector.load %arg4[%c0_9, %c0_10] : memref<1x128xf32, #tpu.memory_space<vmem>>, vector<1x128xf32>
    %11 = vector.broadcast %10 : vector<1x128xf32> to vector<8x128xf32>
    %12 = arith.addf %9, %11 : vector<8x128xf32>
    %cst_11 = arith.constant 0.000000e+00 : f32
    %13 = vector.broadcast %cst_11 : f32 to vector<8x128xf32>
    %14 = arith.maximumf %12, %13 : vector<8x128xf32>
    %c0_12 = arith.constant 0 : index
    %c0_13 = arith.constant 0 : index
    %15 = vector.load %arg1[%c0_12, %c0_13] : memref<8x8xf32, #tpu.memory_space<vmem>>, vector<8x8xf32>
    %cst_14 = arith.constant dense<0.000000e+00> : vector<8x128xf32>
    %16 = tpu.matmul %15, %14, %cst_14 {dimension_numbers = #tpu.dot_dimension_numbers<[1], [0], [0], [1], [0, 0, 1, 1], [], []>} : vector<8x8xf32>, vector<8x128xf32>, vector<8x128xf32> -> vector<8x128xf32>
    %17 = arith.truncf %16 : vector<8x128xf32> to vector<8x128xbf16>
    %c0_15 = arith.constant 0 : index
    %c0_16 = arith.constant 0 : index
    %18 = vector.load %arg6[%c0_15, %c0_16] : memref<128x128xbf16, #tpu.memory_space<vmem>>, vector<128x128xbf16>
    %cst_17 = arith.constant dense<0.000000e+00> : vector<8x128xf32>
    %19 = tpu.matmul %17, %18, %cst_17 {dimension_numbers = #tpu.dot_dimension_numbers<[1], [0], [0], [1], [0, 0, 1, 1], [], []>} : vector<8x128xbf16>, vector<128x128xbf16>, vector<8x128xf32> -> vector<8x128xf32>
    %20 = arith.truncf %14 : vector<8x128xf32> to vector<8x128xbf16>
    %c0_18 = arith.constant 0 : index
    %c0_19 = arith.constant 0 : index
    %21 = vector.load %arg8[%c0_18, %c0_19] : memref<128x128xbf16, #tpu.memory_space<vmem>>, vector<128x128xbf16>
    %cst_20 = arith.constant dense<0.000000e+00> : vector<8x128xf32>
    %22 = tpu.matmul %20, %21, %cst_20 {dimension_numbers = #tpu.dot_dimension_numbers<[1], [0], [0], [1], [0, 0, 1, 1], [], []>} : vector<8x128xbf16>, vector<128x128xbf16>, vector<8x128xf32> -> vector<8x128xf32>
    %23 = arith.addf %19, %22 : vector<8x128xf32>
    %c0_21 = arith.constant 0 : index
    %c0_22 = arith.constant 0 : index
    %24 = vector.load %arg7[%c0_21, %c0_22] : memref<1x128xf32, #tpu.memory_space<vmem>>, vector<1x128xf32>
    %25 = vector.broadcast %24 : vector<1x128xf32> to vector<8x128xf32>
    %26 = arith.addf %23, %25 : vector<8x128xf32>
    %cst_23 = arith.constant 0.000000e+00 : f32
    %27 = vector.broadcast %cst_23 : f32 to vector<8x128xf32>
    %28 = arith.maximumf %26, %27 : vector<8x128xf32>
    %c0_24 = arith.constant 0 : index
    %c0_25 = arith.constant 0 : index
    %29 = vector.load %arg1[%c0_24, %c0_25] : memref<8x8xf32, #tpu.memory_space<vmem>>, vector<8x8xf32>
    %cst_26 = arith.constant dense<0.000000e+00> : vector<8x128xf32>
    %30 = tpu.matmul %29, %28, %cst_26 {dimension_numbers = #tpu.dot_dimension_numbers<[1], [0], [0], [1], [0, 0, 1, 1], [], []>} : vector<8x8xf32>, vector<8x128xf32>, vector<8x128xf32> -> vector<8x128xf32>
    %31 = arith.truncf %30 : vector<8x128xf32> to vector<8x128xbf16>
    %c0_27 = arith.constant 0 : index
    %c0_28 = arith.constant 0 : index
    %32 = vector.load %arg9[%c0_27, %c0_28] : memref<128x128xbf16, #tpu.memory_space<vmem>>, vector<128x128xbf16>
    %cst_29 = arith.constant dense<0.000000e+00> : vector<8x128xf32>
    %33 = tpu.matmul %31, %32, %cst_29 {dimension_numbers = #tpu.dot_dimension_numbers<[1], [0], [0], [1], [0, 0, 1, 1], [], []>} : vector<8x128xbf16>, vector<128x128xbf16>, vector<8x128xf32> -> vector<8x128xf32>
    %34 = arith.truncf %28 : vector<8x128xf32> to vector<8x128xbf16>
    %c0_30 = arith.constant 0 : index
    %c0_31 = arith.constant 0 : index
    %35 = vector.load %arg11[%c0_30, %c0_31] : memref<128x128xbf16, #tpu.memory_space<vmem>>, vector<128x128xbf16>
    %cst_32 = arith.constant dense<0.000000e+00> : vector<8x128xf32>
    %36 = tpu.matmul %34, %35, %cst_32 {dimension_numbers = #tpu.dot_dimension_numbers<[1], [0], [0], [1], [0, 0, 1, 1], [], []>} : vector<8x128xbf16>, vector<128x128xbf16>, vector<8x128xf32> -> vector<8x128xf32>
    %37 = arith.addf %33, %36 : vector<8x128xf32>
    %c0_33 = arith.constant 0 : index
    %c0_34 = arith.constant 0 : index
    %38 = vector.load %arg10[%c0_33, %c0_34] : memref<1x128xf32, #tpu.memory_space<vmem>>, vector<1x128xf32>
    %39 = vector.broadcast %38 : vector<1x128xf32> to vector<8x128xf32>
    %40 = arith.addf %37, %39 : vector<8x128xf32>
    %c0_35 = arith.constant 0 : index
    %c0_36 = arith.constant 0 : index
    %41 = vector.load %arg2[%c0_35, %c0_36] : memref<8x8xf32, #tpu.memory_space<vmem>>, vector<8x8xf32>
    %cst_37 = arith.constant dense<0.000000e+00> : vector<8x128xf32>
    %42 = tpu.matmul %41, %40, %cst_37 {dimension_numbers = #tpu.dot_dimension_numbers<[1], [0], [0], [1], [0, 0, 1, 1], [], []>} : vector<8x8xf32>, vector<8x128xf32>, vector<8x128xf32> -> vector<8x128xf32>
    %c0_38 = arith.constant 0 : index
    %c0_39 = arith.constant 0 : index
    %43 = vector.load %arg12[%c0_38, %c0_39] : memref<8x128xf32, #tpu.memory_space<vmem>>, vector<8x128xf32>
    tpu.vector_store %arg12[%c0_38, %c0_39], %42 {strides = array<i32>} : memref<8x128xf32, #tpu.memory_space<vmem>>, vector<8x128xf32>,
    return
  }
}

</mosaic_0001>

<llo_original>
// kernel: tpu_custom_call.1
$region0: #{tpu_custom_call.1}
  #allocation0 [shape = 'u32[]', space=smem, size = 0x4, offset = 0x4, fixed_abs, tag = 'smem constant byte address 0x4 - core index']
  #allocation1 [shape = 'u32[144,128]{1,0:T(1,128)}', space=vmem, size = 0x12000, scoped, tag = 'internal scratch']
  %s0 = inlined_call_operand.hbm [shape: f32[8,128], index: 0, kind: input, shape index: {}]
  %s1 = inlined_call_operand.hbm [shape: f32[8,8], index: 1, kind: input, shape index: {}]
  %s2 = inlined_call_operand.hbm [shape: f32[8,8], index: 2, kind: input, shape index: {}]
  %s3 = inlined_call_operand.hbm [shape: bf16[128,128], index: 3, kind: input, shape index: {}]
  %s4 = inlined_call_operand.vmem [shape: f32[1,128], index: 4, kind: input, shape index: {}]
  %s5 = inlined_call_operand.hbm [shape: bf16[128,128], index: 5, kind: input, shape index: {}]
  %s6 = inlined_call_operand.hbm [shape: bf16[128,128], index: 6, kind: input, shape index: {}]
  %s7 = inlined_call_operand.vmem [shape: f32[1,128], index: 7, kind: input, shape index: {}]
  %s8 = inlined_call_operand.hbm [shape: bf16[128,128], index: 8, kind: input, shape index: {}]
  %s9 = inlined_call_operand.hbm [shape: bf16[128,128], index: 9, kind: input, shape index: {}]
  %s10 = inlined_call_operand.vmem [shape: f32[1,128], index: 10, kind: input, shape index: {}]
  %s11 = inlined_call_operand.hbm [shape: bf16[128,128], index: 11, kind: input, shape index: {}]
  %s12 = inlined_call_operand.hbm [shape: f32[8,128], index: 12, kind: output, shape index: {}]
  %s13 = sld [smem:[#allocation0]]
  $region94: #{tpu_custom_call.1} parent=0
    _
  %s15 = ssub.s32 1, %s13
  %s16 = scalar_select 0, %s15, %s13
  $region1: #{tpu_custom_call.1} parent=0
    #allocation2 [shape = 'u8[4096]{0}', space=vmem, size = 0x1000, scoped, tag = 'input window, operand 0, single buffered']
    #allocation3 [shape = 's32[1]{0}', space=sflag, size = 0x4, scoped, tag = 'scoped memory for tpu_custom_call.1']
    #allocation4 [shape = 's32[1]{0}', space=sflag, size = 0x4, scoped, tag = 'scoped memory for tpu_custom_call.1']
    #allocation5 [shape = 'u8[4096]{0}', space=vmem, size = 0x1000, scoped, tag = 'input window, operand 1, single buffered']
    #allocation6 [shape = 's32[1]{0}', space=sflag, size = 0x4, scoped, tag = 'scoped memory for tpu_custom_call.1']
    #allocation7 [shape = 'u8[4096]{0}', space=vmem, size = 0x1000, scoped, tag = 'input window, operand 2, single buffered']
    #allocation8 [shape = 'u8[32768]{0}', space=vmem, size = 0x8000, scoped, tag = 'input window, operand 3, single buffered']
    #allocation9 [shape = 's32[1]{0}', space=sflag, size = 0x4, scoped, tag = 'scoped memory for tpu_custom_call.1']
    #allocation10 [shape = 'u8[32768]{0}', space=vmem, size = 0x8000, scoped, tag = 'input window, operand 5, single buffered']
    #allocation11 [shape = 'u8[32768]{0}', space=vmem, size = 0x8000, scoped, tag = 'input window, operand 6, single buffered']
    #allocation12 [shape = 's32[1]{0}', space=sflag, size = 0x4, scoped, tag = 'scoped memory for tpu_custom_call.1']
    #allocation13 [shape = 'u8[32768]{0}', space=vmem, size = 0x8000, scoped, tag = 'input window, operand 8, single buffered']
    #allocation14 [shape = 'u8[32768]{0}', space=vmem, size = 0x8000, scoped, tag = 'input window, operand 9, single buffered']
    #allocation15 [shape = 's32[1]{0}', space=sflag, size = 0x4, scoped, tag = 'scoped memory for tpu_custom_call.1']
    #allocation16 [shape = 'u8[32768]{0}', space=vmem, size = 0x8000, scoped, tag = 'input window, operand 11, single buffered']
    #allocation17 [shape = 'u8[4096]{0}', space=vmem, size = 0x1000, scoped, tag = 'output window, operand 0, single buffered']
    %17 = vsyncpa [#allocation3], 0
    %18 = vsyncpa [#allocation6], 0
    %19 = vsyncpa [#allocation9], 0
    %20 = vsyncpa [#allocation12], 0
    %21 = vsyncpa [#allocation15], 0
    %22 = vsyncpa [#allocation4], 0
    // Predicated region
    $region2: #{tpu_custom_call.1} parent=1 // pred_check
      _
    $region3: #{tpu_custom_call.1} parent=1 // pred_check_branch
      %24 = sbr.rel (0) target = $region5
    $region4: #{tpu_custom_call.1} parent=1 // pred_region
      %s26 = ssub.s32 128, 128
      %27 = vsyncadd [#allocation3], %s26
      %s29 = sshll.u32 [#allocation2], 4
      %s30 = int_to_ptr.vmem [resolvable:$true] %s29
      %32 = dma.hbm_to_vmem [thread:$0]  %s0, 128, %s30, [#allocation3]
    $region5: #{tpu_custom_call.1} parent=1 // pred_fallthru
      _
    // Predicated region
    $region6: #{tpu_custom_call.1} parent=1 // pred_check
      _
    $region7: #{tpu_custom_call.1} parent=1 // pred_check_branch
      %34 = sbr.rel (0) target = $region9
    $region8: #{tpu_custom_call.1} parent=1 // pred_region
      %s36 = ssub.s32 128, 128
      %37 = vsyncadd [#allocation6], %s36
      %s39 = sshll.u32 [#allocation5], 4
      %s40 = int_to_ptr.vmem [resolvable:$true] %s39
      %42 = dma.hbm_to_vmem [thread:$0]  %s1, 128, %s40, [#allocation6]
    $region9: #{tpu_custom_call.1} parent=1 // pred_fallthru
      _
    // Predicated region
    $region10: #{tpu_custom_call.1} parent=1 // pred_check
      _
    $region11: #{tpu_custom_call.1} parent=1 // pred_check_branch
      %44 = sbr.rel (0) target = $region13
    $region12: #{tpu_custom_call.1} parent=1 // pred_region
      %s46 = ssub.s32 128, 128
      %47 = vsyncadd [#allocation6], %s46
      %s49 = sshll.u32 [#allocation7], 4
      %s50 = int_to_ptr.vmem [resolvable:$true] %s49
      %52 = dma.hbm_to_vmem [thread:$0]  %s2, 128, %s50, [#allocation6]
    $region13: #{tpu_custom_call.1} parent=1 // pred_fallthru
      _
    // Predicated region
    $region14: #{tpu_custom_call.1} parent=1 // pred_check
      _
    $region15: #{tpu_custom_call.1} parent=1 // pred_check_branch
      %54 = sbr.rel (0) target = $region17
    $region16: #{tpu_custom_call.1} parent=1 // pred_region
      %s56 = ssub.s32 1024, 1024
      %57 = vsyncadd [#allocation9], %s56
      %s58 = sshll.u32 [#allocation8], 4
      %s59 = int_to_ptr.vmem [resolvable:$true] %s58
      %64 = dma.hbm_to_vmem [thread:$0]  %s3, 1024, %s59, [#allocation9], 64, 64, 4
    $region17: #{tpu_custom_call.1} parent=1 // pred_fallthru
      _
    // Predicated region
    $region18: #{tpu_custom_call.1} parent=1 // pred_check
      _
    $region19: #{tpu_custom_call.1} parent=1 // pred_check_branch
      %66 = sbr.rel (0) target = $region21
    $region20: #{tpu_custom_call.1} parent=1 // pred_region
      _
    $region21: #{tpu_custom_call.1} parent=1 // pred_fallthru
      _
    // Predicated region
    $region22: #{tpu_custom_call.1} parent=1 // pred_check
      _
    $region23: #{tpu_custom_call.1} parent=1 // pred_check_branch
      %68 = sbr.rel (0) target = $region25
    $region24: #{tpu_custom_call.1} parent=1 // pred_region
      %s70 = ssub.s32 1024, 1024
      %71 = vsyncadd [#allocation9], %s70
      %s72 = sshll.u32 [#allocation10], 4
      %s73 = int_to_ptr.vmem [resolvable:$true] %s72
      %78 = dma.hbm_to_vmem [thread:$0]  %s5, 1024, %s73, [#allocation9], 64, 64, 4
    $region25: #{tpu_custom_call.1} parent=1 // pred_fallthru
      _
    // Predicated region
    $region26: #{tpu_custom_call.1} parent=1 // pred_check
      _
    $region27: #{tpu_custom_call.1} parent=1 // pred_check_branch
      %80 = sbr.rel (0) target = $region29
    $region28: #{tpu_custom_call.1} parent=1 // pred_region
      %s82 = ssub.s32 1024, 1024
      %83 = vsyncadd [#allocation12], %s82
      %s84 = sshll.u32 [#allocation11], 4
      %s85 = int_to_ptr.vmem [resolvable:$true] %s84
      %90 = dma.hbm_to_vmem [thread:$0]  %s6, 1024, %s85, [#allocation12], 64, 64, 4
    $region29: #{tpu_custom_call.1} parent=1 // pred_fallthru
      _
    // Predicated region
    $region30: #{tpu_custom_call.1} parent=1 // pred_check
      _
    $region31: #{tpu_custom_call.1} parent=1 // pred_check_branch
      %92 = sbr.rel (0) target = $region33
    $region32: #{tpu_custom_call.1} parent=1 // pred_region
      _
    $region33: #{tpu_custom_call.1} parent=1 // pred_fallthru
      _
    // Predicated region
    $region34: #{tpu_custom_call.1} parent=1 // pred_check
      _
    $region35: #{tpu_custom_call.1} parent=1 // pred_check_branch
      %94 = sbr.rel (0) target = $region37
    $region36: #{tpu_custom_call.1} parent=1 // pred_region
      %s96 = ssub.s32 1024, 1024
      %97 = vsyncadd [#allocation12], %s96
      %s98 = sshll.u32 [#allocation13], 4
      %s99 = int_to_ptr.vmem [resolvable:$true] %s98
      %104 = dma.hbm_to_vmem [thread:$0]  %s8, 1024, %s99, [#allocation12], 64, 64, 4
    $region37: #{tpu_custom_call.1} parent=1 // pred_fallthru
      _
    // Predicated region
    $region38: #{tpu_custom_call.1} parent=1 // pred_check
      _
    $region39: #{tpu_custom_call.1} parent=1 // pred_check_branch
      %106 = sbr.rel (0) target = $region41
    $region40: #{tpu_custom_call.1} parent=1 // pred_region
      %s108 = ssub.s32 1024, 1024
      %109 = vsyncadd [#allocation15], %s108
      %s110 = sshll.u32 [#allocation14], 4
      %s111 = int_to_ptr.vmem [resolvable:$true] %s110
      %116 = dma.hbm_to_vmem [thread:$0]  %s9, 1024, %s111, [#allocation15], 64, 64, 4
    $region41: #{tpu_custom_call.1} parent=1 // pred_fallthru
      _
    // Predicated region
    $region42: #{tpu_custom_call.1} parent=1 // pred_check
      _
    $region43: #{tpu_custom_call.1} parent=1 // pred_check_branch
      %118 = sbr.rel (0) target = $region45
    $region44: #{tpu_custom_call.1} parent=1 // pred_region
      _
    $region45: #{tpu_custom_call.1} parent=1 // pred_fallthru
      _
    // Predicated region
    $region46: #{tpu_custom_call.1} parent=1 // pred_check
      _
    $region47: #{tpu_custom_call.1} parent=1 // pred_check_branch
      %120 = sbr.rel (0) target = $region49
    $region48: #{tpu_custom_call.1} parent=1 // pred_region
      %s122 = ssub.s32 1024, 1024
      %123 = vsyncadd [#allocation15], %s122
      %s124 = sshll.u32 [#allocation16], 4
      %s125 = int_to_ptr.vmem [resolvable:$true] %s124
      %130 = dma.hbm_to_vmem [thread:$0]  %s11, 1024, %s125, [#allocation15], 64, 64, 4
    $region49: #{tpu_custom_call.1} parent=1 // pred_fallthru
      _
    // Predicated region
    $region50: #{tpu_custom_call.1} parent=1 // pred_check
      _
    $region51: #{tpu_custom_call.1} parent=1 // pred_check_branch
      %132 = sbr.rel (0) target = $region53
    $region52: #{tpu_custom_call.1} parent=1 // pred_region
      %133 = dma.done [#allocation3], 128
    $region53: #{tpu_custom_call.1} parent=1 // pred_fallthru
      _
    // Predicated region
    $region54: #{tpu_custom_call.1} parent=1 // pred_check
      _
    $region55: #{tpu_custom_call.1} parent=1 // pred_check_branch
      %135 = sbr.rel (0) target = $region57
    $region56: #{tpu_custom_call.1} parent=1 // pred_region
      %136 = dma.done [#allocation6], 128
    $region57: #{tpu_custom_call.1} parent=1 // pred_fallthru
      _
    // Predicated region
    $region58: #{tpu_custom_call.1} parent=1 // pred_check
      _
    $region59: #{tpu_custom_call.1} parent=1 // pred_check_branch
      %138 = sbr.rel (0) target = $region61
    $region60: #{tpu_custom_call.1} parent=1 // pred_region
      %139 = dma.done [#allocation6], 128
    $region61: #{tpu_custom_call.1} parent=1 // pred_fallthru
      _
    // Predicated region
    $region62: #{tpu_custom_call.1} parent=1 // pred_check
      _
    $region63: #{tpu_custom_call.1} parent=1 // pred_check_branch
      %141 = sbr.rel (0) target = $region65
    $region64: #{tpu_custom_call.1} parent=1 // pred_region
      %142 = dma.done [#allocation9], 1024
    $region65: #{tpu_custom_call.1} parent=1 // pred_fallthru
      _
    // Predicated region
    $region66: #{tpu_custom_call.1} parent=1 // pred_check
      _
    $region67: #{tpu_custom_call.1} parent=1 // pred_check_branch
      %144 = sbr.rel (0) target = $region69
    $region68: #{tpu_custom_call.1} parent=1 // pred_region
      %145 = dma.done [#allocation9], 1024
    $region69: #{tpu_custom_call.1} parent=1 // pred_fallthru
      _
    // Predicated region
    $region70: #{tpu_custom_call.1} parent=1 // pred_check
      _
    $region71: #{tpu_custom_call.1} parent=1 // pred_check_branch
      %147 = sbr.rel (0) target = $region73
    $region72: #{tpu_custom_call.1} parent=1 // pred_region
      %148 = dma.done [#allocation12], 1024
    $region73: #{tpu_custom_call.1} parent=1 // pred_fallthru
      _
    // Predicated region
    $region74: #{tpu_custom_call.1} parent=1 // pred_check
      _
    $region75: #{tpu_custom_call.1} parent=1 // pred_check_branch
      %150 = sbr.rel (0) target = $region77
    $region76: #{tpu_custom_call.1} parent=1 // pred_region
      %151 = dma.done [#allocation12], 1024
    $region77: #{tpu_custom_call.1} parent=1 // pred_fallthru
      _
    // Predicated region
    $region78: #{tpu_custom_call.1} parent=1 // pred_check
      _
    $region79: #{tpu_custom_call.1} parent=1 // pred_check_branch
      %153 = sbr.rel (0) target = $region81
    $region80: #{tpu_custom_call.1} parent=1 // pred_region
      %154 = dma.done [#allocation15], 1024
    $region81: #{tpu_custom_call.1} parent=1 // pred_fallthru
      _
    // Predicated region
    $region82: #{tpu_custom_call.1} parent=1 // pred_check
      _
    $region83: #{tpu_custom_call.1} parent=1 // pred_check_branch
      %156 = sbr.rel (0) target = $region85
    $region84: #{tpu_custom_call.1} parent=1 // pred_region
      %157 = dma.done [#allocation15], 1024
    $region85: #{tpu_custom_call.1} parent=1 // pred_fallthru
      _
    %v159 = vld [vmem:[#allocation2] sm:$0xff]
    %v160 = vld [vmem:[#allocation5] sm:$0xff]
    %vm161 = vcmask 64512
    %v163 = vsel %vm161, %v160, 0
    %165 = vmatprep.subr.mxu0 0.0
    %166 = vmatpush1.msra.mxu0 %v159
    %167 = vmatprep.subr.mxu0 0.0
    %168 = vmatpush1.msra.mxu0 0.0
    %169 = vmatprep.subr.mxu0 0.0
    %170 = vmatpush1.msra.mxu0 0.0
    %171 = vmatprep.subr.mxu0 0.0
    %172 = vmatpush1.msra.mxu0 0.0
    %173 = vmatprep.subr.mxu0 0.0
    %174 = vmatpush1.msra.mxu0 0.0
    %175 = vmatprep.subr.mxu0 0.0
    %176 = vmatpush1.msra.mxu0 0.0
    %177 = vmatprep.subr.mxu0 0.0
    %178 = vmatpush1.msra.mxu0 0.0
    %179 = vmatprep.subr.mxu0 0.0
    %180 = vmatpush1.msra.mxu0 0.0
    %181 = vmatprep.subr.mxu0 0.0
    %182 = vmatpush1.msra.mxu0 0.0
    %183 = vmatprep.subr.mxu0 0.0
    %184 = vmatpush1.msra.mxu0 0.0
    %185 = vmatprep.subr.mxu0 0.0
    %186 = vmatpush1.msra.mxu0 0.0
    %187 = vmatprep.subr.mxu0 0.0
    %188 = vmatpush1.msra.mxu0 0.0
    %189 = vmatprep.subr.mxu0 0.0
    %190 = vmatpush1.msra.mxu0 0.0
    %191 = vmatprep.subr.mxu0 0.0
    %192 = vmatpush1.msra.mxu0 0.0
    %193 = vmatprep.subr.mxu0 0.0
    %194 = vmatpush1.msra.mxu0 0.0
    %195 = vmatprep.subr.mxu0 0.0
    %196 = vmatpush1.msra.mxu0 0.0
    %197 = vmatprep.subr.mxu0 0.0
    %198 = vmatpush1.msra.mxu0 0.0
    %199 = vmatprep.subr.mxu0 0.0
    %200 = vmatpush1.msra.mxu0 0.0
    %201 = vmatprep.subr.mxu0 0.0
    %202 = vmatpush1.msra.mxu0 0.0
    %203 = vmatprep.subr.mxu0 0.0
    %204 = vmatpush1.msra.mxu0 0.0
    %205 = vmatprep.subr.mxu0 0.0
    %206 = vmatpush1.msra.mxu0 0.0
    %207 = vmatprep.subr.mxu0 0.0
    %208 = vmatpush1.msra.mxu0 0.0
    %209 = vmatprep.subr.mxu0 0.0
    %210 = vmatpush1.msra.mxu0 0.0
    %211 = vmatprep.subr.mxu0 0.0
    %212 = vmatpush1.msra.mxu0 0.0
    %213 = vmatprep.subr.mxu0 0.0
    %214 = vmatpush1.msra.mxu0 0.0
    %215 = vmatprep.subr.mxu0 0.0
    %216 = vmatpush1.msra.mxu0 0.0
    %217 = vmatprep.subr.mxu0 0.0
    %218 = vmatpush1.msra.mxu0 0.0
    %219 = vmatprep.subr.mxu0 0.0
    %220 = vmatpush1.msra.mxu0 0.0
    %221 = vmatprep.subr.mxu0 0.0
    %222 = vmatpush1.msra.mxu0 0.0
    %223 = vmatprep.subr.mxu0 0.0
    %224 = vmatpush1.msra.mxu0 0.0
    %225 = vmatprep.subr.mxu0 0.0
    %226 = vmatpush1.msra.mxu0 0.0
    %227 = vmatprep.subr.mxu0 0.0
    %228 = vmatpush1.msra.mxu0 0.0
    %229 = vmatprep.mubr.f32.mxu0 0.0
    %230 = vmatmul.mubr.f32.gmra.mrb[0].mxu0 %v163
    %v231 = vpop.f32.mrb[0].mxu0
    %v232 = vadd.f32 0.0, %v231
    %v233 = vpop.f32.mrb[0].mxu0
    %234 = vdwg.mxu0
    %v235 = vpack.c.bf16 %v232, %v232
    %v236 = vld [vmem:[#allocation8] sm:$0xf]
    %v237 = vld [vmem:[#allocation8 + $0x4] sm:$0xf]
    %v238 = vld [vmem:[#allocation8 + $0x8] sm:$0xf]
    %v239 = vld [vmem:[#allocation8 + $0xc] sm:$0xf]
    %v240 = vld [vmem:[#allocation8 + $0x10] sm:$0xf]
    %v241 = vld [vmem:[#allocation8 + $0x14] sm:$0xf]
    %v242 = vld [vmem:[#allocation8 + $0x18] sm:$0xf]
    %v243 = vld [vmem:[#allocation8 + $0x1c] sm:$0xf]
    %v244 = vld [vmem:[#allocation8 + $0x20] sm:$0xf]
    %v245 = vld [vmem:[#allocation8 + $0x24] sm:$0xf]
    %v246 = vld [vmem:[#allocation8 + $0x28] sm:$0xf]
    %v247 = vld [vmem:[#allocation8 + $0x2c] sm:$0xf]
    %v248 = vld [vmem:[#allocation8 + $0x30] sm:$0xf]
    %v249 = vld [vmem:[#allocation8 + $0x34] sm:$0xf]
    %v250 = vld [vmem:[#allocation8 + $0x38] sm:$0xf]
    %v251 = vld [vmem:[#allocation8 + $0x3c] sm:$0xf]
    %v252 = vpack.c.bf16 %v159, %v159
    %v253 = vld [vmem:[#allocation10] sm:$0xf]
    %v254 = vld [vmem:[#allocation10 + $0x4] sm:$0xf]
    %v255 = vld [vmem:[#allocation10 + $0x8] sm:$0xf]
    %v256 = vld [vmem:[#allocation10 + $0xc] sm:$0xf]
    %v257 = vld [vmem:[#allocation10 + $0x10] sm:$0xf]
    %v258 = vld [vmem:[#allocation10 + $0x14] sm:$0xf]
    %v259 = vld [vmem:[#allocation10 + $0x18] sm:$0xf]
    %v260 = vld [vmem:[#allocation10 + $0x1c] sm:$0xf]
    %v261 = vld [vmem:[#allocation10 + $0x20] sm:$0xf]
    %v262 = vld [vmem:[#allocation10 + $0x24] sm:$0xf]
    %v263 = vld [vmem:[#allocation10 + $0x28] sm:$0xf]
    %v264 = vld [vmem:[#allocation10 + $0x2c] sm:$0xf]
    %v265 = vld [vmem:[#allocation10 + $0x30] sm:$0xf]
    %v266 = vld [vmem:[#allocation10 + $0x34] sm:$0xf]
    %v267 = vld [vmem:[#allocation10 + $0x38] sm:$0xf]
    %v268 = vld [vmem:[#allocation10 + $0x3c] sm:$0xf]
    %v285 = vunpack.c.l.b16 %v253
    %v286 = vunpack.c.l.b16 %v254
    %v287 = vunpack.c.l.b16 %v255
    %v288 = vunpack.c.l.b16 %v256
    %v289 = vunpack.c.l.b16 %v257
    %v290 = vunpack.c.l.b16 %v258
    %v291 = vunpack.c.l.b16 %v259
    %v292 = vunpack.c.l.b16 %v260
    %v293 = vunpack.c.l.b16 %v261
    %v294 = vunpack.c.l.b16 %v262
    %v295 = vunpack.c.l.b16 %v263
    %v296 = vunpack.c.l.b16 %v264
    %v297 = vunpack.c.l.b16 %v265
    %v298 = vunpack.c.l.b16 %v266
    %v299 = vunpack.c.l.b16 %v267
    %v300 = vunpack.c.l.b16 %v268
    %v301 = vpack.c.b16 %v286, %v285
    %v302 = vpack.c.b16 %v288, %v287
    %v303 = vpack.c.b16 %v290, %v289
    %v304 = vpack.c.b16 %v292, %v291
    %v305 = vpack.c.b16 %v294, %v293
    %v306 = vpack.c.b16 %v296, %v295
    %v307 = vpack.c.b16 %v298, %v297
    %v308 = vpack.c.b16 %v300, %v299
    %317 = vmatprep.subr.bf16.mxu0 0
    %318 = vmatpush1.bf16.msra.mxu0 %v301
    %319 = vmatprep.subr.bf16.mxu0 0
    %320 = vmatpush1.bf16.msra.mxu0 %v302
    %321 = vmatprep.subr.bf16.mxu0 0
    %322 = vmatpush1.bf16.msra.mxu0 %v303
    %323 = vmatprep.subr.bf16.mxu0 0
    %324 = vmatpush1.bf16.msra.mxu0 %v304
    %325 = vmatprep.subr.bf16.mxu0 0
    %326 = vmatpush1.bf16.msra.mxu0 %v305
    %327 = vmatprep.subr.bf16.mxu0 0
    %328 = vmatpush1.bf16.msra.mxu0 %v306
    %329 = vmatprep.subr.bf16.mxu0 0
    %330 = vmatpush1.bf16.msra.mxu0 %v307
    %331 = vmatprep.subr.bf16.mxu0 0
    %332 = vmatpush1.bf16.msra.mxu0 %v308
    %333 = vmatprep.subr.bf16.mxu0 0
    %334 = vmatpush1.bf16.msra.mxu0 0
    %335 = vmatprep.subr.bf16.mxu0 0
    %336 = vmatpush1.bf16.msra.mxu0 0
    %337 = vmatprep.subr.bf16.mxu0 0
    %338 = vmatpush1.bf16.msra.mxu0 0
    %339 = vmatprep.subr.bf16.mxu0 0
    %340 = vmatpush1.bf16.msra.mxu0 0
    %341 = vmatprep.subr.bf16.mxu0 0
    %342 = vmatpush1.bf16.msra.mxu0 0
    %343 = vmatprep.subr.bf16.mxu0 0
    %344 = vmatpush1.bf16.msra.mxu0 0
    %345 = vmatprep.subr.bf16.mxu0 0
    %346 = vmatpush1.bf16.msra.mxu0 0
    %347 = vmatprep.subr.bf16.mxu0 0
    %348 = vmatpush1.bf16.msra.mxu0 0
    %349 = vmatprep.mubr.bf16.mxu0 0
    %350 = vmatmul.mubr.bf16.gmra.mrb[0].mxu0 %v252
    %v351 = vpop.f32.mrb[0].mxu0
    %v352 = vadd.f32 0.0, %v351
    %v353 = vpop.f32.mrb[0].mxu0
    %v354 = vpop.f32.mrb[0].mxu0
    %v355 = vpop.f32.mrb[0].mxu0
    %356 = vdwg.mxu0
    %v373 = vunpack.c.l.b16 %v236
    %v374 = vunpack.c.l.b16 %v237
    %v375 = vunpack.c.l.b16 %v238
    %v376 = vunpack.c.l.b16 %v239
    %v377 = vunpack.c.l.b16 %v240
    %v378 = vunpack.c.l.b16 %v241
    %v379 = vunpack.c.l.b16 %v242
    %v380 = vunpack.c.l.b16 %v243
    %v381 = vunpack.c.l.b16 %v244
    %v382 = vunpack.c.l.b16 %v245
    %v383 = vunpack.c.l.b16 %v246
    %v384 = vunpack.c.l.b16 %v247
    %v385 = vunpack.c.l.b16 %v248
    %v386 = vunpack.c.l.b16 %v249
    %v387 = vunpack.c.l.b16 %v250
    %v388 = vunpack.c.l.b16 %v251
    %v389 = vpack.c.b16 %v374, %v373
    %v390 = vpack.c.b16 %v376, %v375
    %v391 = vpack.c.b16 %v378, %v377
    %v392 = vpack.c.b16 %v380, %v379
    %v393 = vpack.c.b16 %v382, %v381
    %v394 = vpack.c.b16 %v384, %v383
    %v395 = vpack.c.b16 %v386, %v385
    %v396 = vpack.c.b16 %v388, %v387
    %405 = vmatprep.subr.bf16.mxu0 0
    %406 = vmatpush1.bf16.msra.mxu0 %v389
    %407 = vmatprep.subr.bf16.mxu0 0
    %408 = vmatpush1.bf16.msra.mxu0 %v390
    %409 = vmatprep.subr.bf16.mxu0 0
    %410 = vmatpush1.bf16.msra.mxu0 %v391
    %411 = vmatprep.subr.bf16.mxu0 0
    %412 = vmatpush1.bf16.msra.mxu0 %v392
    %413 = vmatprep.subr.bf16.mxu0 0
    %414 = vmatpush1.bf16.msra.mxu0 %v393
    %415 = vmatprep.subr.bf16.mxu0 0
    %416 = vmatpush1.bf16.msra.mxu0 %v394
    %417 = vmatprep.subr.bf16.mxu0 0
    %418 = vmatpush1.bf16.msra.mxu0 %v395
    %419 = vmatprep.subr.bf16.mxu0 0
    %420 = vmatpush1.bf16.msra.mxu0 %v396
    %421 = vmatprep.subr.bf16.mxu0 0
    %422 = vmatpush1.bf16.msra.mxu0 0
    %423 = vmatprep.subr.bf16.mxu0 0
    %424 = vmatpush1.bf16.msra.mxu0 0
    %425 = vmatprep.subr.bf16.mxu0 0
    %426 = vmatpush1.bf16.msra.mxu0 0
    %427 = vmatprep.subr.bf16.mxu0 0
    %428 = vmatpush1.bf16.msra.mxu0 0
    %429 = vmatprep.subr.bf16.mxu0 0
    %430 = vmatpush1.bf16.msra.mxu0 0
    %431 = vmatprep.subr.bf16.mxu0 0
    %432 = vmatpush1.bf16.msra.mxu0 0
    %433 = vmatprep.subr.bf16.mxu0 0
    %434 = vmatpush1.bf16.msra.mxu0 0
    %435 = vmatprep.subr.bf16.mxu0 0
    %436 = vmatpush1.bf16.msra.mxu0 0
    %437 = vmatprep.mubr.bf16.mxu0 0
    %438 = vmatmul.mubr.bf16.gmra.mrb[0].mxu0 %v235
    %v439 = vpop.f32.mrb[0].mxu0
    %v440 = vadd.f32 %v352, %v439
    %v441 = vpop.f32.mrb[0].mxu0
    %v442 = vpop.f32.mrb[0].mxu0
    %v443 = vpop.f32.mrb[0].mxu0
    %444 = vdwg.mxu0
    %v445 = vld [vmem:[%s4] sm:$0x1]
    %v447 = vlaneseq
    %v448 = vshrl.u32 %v447, 7
    %v449 = vsub.s32 0, %v448
    %v450 = vrot.slane %v445, %v449
    %v452 = vadd.f32 %v440, %v450
    %v453 = vmax.f32 %v452, 0.0
    %454 = vmatprep.subr.mxu0 0.0
    %455 = vmatpush1.msra.mxu0 %v453
    %456 = vmatprep.subr.mxu0 0.0
    %457 = vmatpush1.msra.mxu0 0.0
    %458 = vmatprep.subr.mxu0 0.0
    %459 = vmatpush1.msra.mxu0 0.0
    %460 = vmatprep.subr.mxu0 0.0
    %461 = vmatpush1.msra.mxu0 0.0
    %462 = vmatprep.subr.mxu0 0.0
    %463 = vmatpush1.msra.mxu0 0.0
    %464 = vmatprep.subr.mxu0 0.0
    %465 = vmatpush1.msra.mxu0 0.0
    %466 = vmatprep.subr.mxu0 0.0
    %467 = vmatpush1.msra.mxu0 0.0
    %468 = vmatprep.subr.mxu0 0.0
    %469 = vmatpush1.msra.mxu0 0.0
    %470 = vmatprep.subr.mxu0 0.0
    %471 = vmatpush1.msra.mxu0 0.0
    %472 = vmatprep.subr.mxu0 0.0
    %473 = vmatpush1.msra.mxu0 0.0
    %474 = vmatprep.subr.mxu0 0.0
    %475 = vmatpush1.msra.mxu0 0.0
    %476 = vmatprep.subr.mxu0 0.0
    %477 = vmatpush1.msra.mxu0 0.0
    %478 = vmatprep.subr.mxu0 0.0
    %479 = vmatpush1.msra.mxu0 0.0
    %480 = vmatprep.subr.mxu0 0.0
    %481 = vmatpush1.msra.mxu0 0.0
    %482 = vmatprep.subr.mxu0 0.0
    %483 = vmatpush1.msra.mxu0 0.0
    %484 = vmatprep.subr.mxu0 0.0
    %485 = vmatpush1.msra.mxu0 0.0
    %486 = vmatprep.subr.mxu0 0.0
    %487 = vmatpush1.msra.mxu0 0.0
    %488 = vmatprep.subr.mxu0 0.0
    %489 = vmatpush1.msra.mxu0 0.0
    %490 = vmatprep.subr.mxu0 0.0
    %491 = vmatpush1.msra.mxu0 0.0
    %492 = vmatprep.subr.mxu0 0.0
    %493 = vmatpush1.msra.mxu0 0.0
    %494 = vmatprep.subr.mxu0 0.0
    %495 = vmatpush1.msra.mxu0 0.0
    %496 = vmatprep.subr.mxu0 0.0
    %497 = vmatpush1.msra.mxu0 0.0
    %498 = vmatprep.subr.mxu0 0.0
    %499 = vmatpush1.msra.mxu0 0.0
    %500 = vmatprep.subr.mxu0 0.0
    %501 = vmatpush1.msra.mxu0 0.0
    %502 = vmatprep.subr.mxu0 0.0
    %503 = vmatpush1.msra.mxu0 0.0
    %504 = vmatprep.subr.mxu0 0.0
    %505 = vmatpush1.msra.mxu0 0.0
    %506 = vmatprep.subr.mxu0 0.0
    %507 = vmatpush1.msra.mxu0 0.0
    %508 = vmatprep.subr.mxu0 0.0
    %509 = vmatpush1.msra.mxu0 0.0
    %510 = vmatprep.subr.mxu0 0.0
    %511 = vmatpush1.msra.mxu0 0.0
    %512 = vmatprep.subr.mxu0 0.0
    %513 = vmatpush1.msra.mxu0 0.0
    %514 = vmatprep.subr.mxu0 0.0
    %515 = vmatpush1.msra.mxu0 0.0
    %516 = vmatprep.subr.mxu0 0.0
    %517 = vmatpush1.msra.mxu0 0.0
    %518 = vmatprep.mubr.f32.mxu0 0.0
    %519 = vmatmul.mubr.f32.gmra.mrb[0].mxu0 %v163
    %v520 = vpop.f32.mrb[0].mxu0
    %v521 = vadd.f32 0.0, %v520
    %v522 = vpop.f32.mrb[0].mxu0
    %523 = vdwg.mxu0
    %v524 = vpack.c.bf16 %v521, %v521
    %v525 = vld [vmem:[#allocation11] sm:$0xf]
    %v526 = vld [vmem:[#allocation11 + $0x4] sm:$0xf]
    %v527 = vld [vmem:[#allocation11 + $0x8] sm:$0xf]
    %v528 = vld [vmem:[#allocation11 + $0xc] sm:$0xf]
    %v529 = vld [vmem:[#allocation11 + $0x10] sm:$0xf]
    %v530 = vld [vmem:[#allocation11 + $0x14] sm:$0xf]
    %v531 = vld [vmem:[#allocation11 + $0x18] sm:$0xf]
    %v532 = vld [vmem:[#allocation11 + $0x1c] sm:$0xf]
    %v533 = vld [vmem:[#allocation11 + $0x20] sm:$0xf]
    %v534 = vld [vmem:[#allocation11 + $0x24] sm:$0xf]
    %v535 = vld [vmem:[#allocation11 + $0x28] sm:$0xf]
    %v536 = vld [vmem:[#allocation11 + $0x2c] sm:$0xf]
    %v537 = vld [vmem:[#allocation11 + $0x30] sm:$0xf]
    %v538 = vld [vmem:[#allocation11 + $0x34] sm:$0xf]
    %v539 = vld [vmem:[#allocation11 + $0x38] sm:$0xf]
    %v540 = vld [vmem:[#allocation11 + $0x3c] sm:$0xf]
    %v541 = vpack.c.bf16 %v453, %v453
    %v542 = vld [vmem:[#allocation13] sm:$0xf]
    %v543 = vld [vmem:[#allocation13 + $0x4] sm:$0xf]
    %v544 = vld [vmem:[#allocation13 + $0x8] sm:$0xf]
    %v545 = vld [vmem:[#allocation13 + $0xc] sm:$0xf]
    %v546 = vld [vmem:[#allocation13 + $0x10] sm:$0xf]
    %v547 = vld [vmem:[#allocation13 + $0x14] sm:$0xf]
    %v548 = vld [vmem:[#allocation13 + $0x18] sm:$0xf]
    %v549 = vld [vmem:[#allocation13 + $0x1c] sm:$0xf]
    %v550 = vld [vmem:[#allocation13 + $0x20] sm:$0xf]
    %v551 = vld [vmem:[#allocation13 + $0x24] sm:$0xf]
    %v552 = vld [vmem:[#allocation13 + $0x28] sm:$0xf]
    %v553 = vld [vmem:[#allocation13 + $0x2c] sm:$0xf]
    %v554 = vld [vmem:[#allocation13 + $0x30] sm:$0xf]
    %v555 = vld [vmem:[#allocation13 + $0x34] sm:$0xf]
    %v556 = vld [vmem:[#allocation13 + $0x38] sm:$0xf]
    %v557 = vld [vmem:[#allocation13 + $0x3c] sm:$0xf]
    %v574 = vunpack.c.l.b16 %v542
    %v575 = vunpack.c.l.b16 %v543
    %v576 = vunpack.c.l.b16 %v544
    %v577 = vunpack.c.l.b16 %v545
    %v578 = vunpack.c.l.b16 %v546
    %v579 = vunpack.c.l.b16 %v547
    %v580 = vunpack.c.l.b16 %v548
    %v581 = vunpack.c.l.b16 %v549
    %v582 = vunpack.c.l.b16 %v550
    %v583 = vunpack.c.l.b16 %v551
    %v584 = vunpack.c.l.b16 %v552
    %v585 = vunpack.c.l.b16 %v553
    %v586 = vunpack.c.l.b16 %v554
    %v587 = vunpack.c.l.b16 %v555
    %v588 = vunpack.c.l.b16 %v556
    %v589 = vunpack.c.l.b16 %v557
    %v590 = vpack.c.b16 %v575, %v574
    %v591 = vpack.c.b16 %v577, %v576
    %v592 = vpack.c.b16 %v579, %v578
    %v593 = vpack.c.b16 %v581, %v580
    %v594 = vpack.c.b16 %v583, %v582
    %v595 = vpack.c.b16 %v585, %v584
    %v596 = vpack.c.b16 %v587, %v586
    %v597 = vpack.c.b16 %v589, %v588
    %606 = vmatprep.subr.bf16.mxu0 0
    %607 = vmatpush1.bf16.msra.mxu0 %v590
    %608 = vmatprep.subr.bf16.mxu0 0
    %609 = vmatpush1.bf16.msra.mxu0 %v591
    %610 = vmatprep.subr.bf16.mxu0 0
    %611 = vmatpush1.bf16.msra.mxu0 %v592
    %612 = vmatprep.subr.bf16.mxu0 0
    %613 = vmatpush1.bf16.msra.mxu0 %v593
    %614 = vmatprep.subr.bf16.mxu0 0
    %615 = vmatpush1.bf16.msra.mxu0 %v594
    %616 = vmatprep.subr.bf16.mxu0 0
    %617 = vmatpush1.bf16.msra.mxu0 %v595
    %618 = vmatprep.subr.bf16.mxu0 0
    %619 = vmatpush1.bf16.msra.mxu0 %v596
    %620 = vmatprep.subr.bf16.mxu0 0
    %621 = vmatpush1.bf16.msra.mxu0 %v597
    %622 = vmatprep.subr.bf16.mxu0 0
    %623 = vmatpush1.bf16.msra.mxu0 0
    %624 = vmatprep.subr.bf16.mxu0 0
    %625 = vmatpush1.bf16.msra.mxu0 0
    %626 = vmatprep.subr.bf16.mxu0 0
    %627 = vmatpush1.bf16.msra.mxu0 0
    %628 = vmatprep.subr.bf16.mxu0 0
    %629 = vmatpush1.bf16.msra.mxu0 0
    %630 = vmatprep.subr.bf16.mxu0 0
    %631 = vmatpush1.bf16.msra.mxu0 0
    %632 = vmatprep.subr.bf16.mxu0 0
    %633 = vmatpush1.bf16.msra.mxu0 0
    %634 = vmatprep.subr.bf16.mxu0 0
    %635 = vmatpush1.bf16.msra.mxu0 0
    %636 = vmatprep.subr.bf16.mxu0 0
    %637 = vmatpush1.bf16.msra.mxu0 0
    %638 = vmatprep.mubr.bf16.mxu0 0
    %639 = vmatmul.mubr.bf16.gmra.mrb[0].mxu0 %v541
    %v640 = vpop.f32.mrb[0].mxu0
    %v641 = vadd.f32 0.0, %v640
    %v642 = vpop.f32.mrb[0].mxu0
    %v643 = vpop.f32.mrb[0].mxu0
    %v644 = vpop.f32.mrb[0].mxu0
    %645 = vdwg.mxu0
    %v662 = vunpack.c.l.b16 %v525
    %v663 = vunpack.c.l.b16 %v526
    %v664 = vunpack.c.l.b16 %v527
    %v665 = vunpack.c.l.b16 %v528
    %v666 = vunpack.c.l.b16 %v529
    %v667 = vunpack.c.l.b16 %v530
    %v668 = vunpack.c.l.b16 %v531
    %v669 = vunpack.c.l.b16 %v532
    %v670 = vunpack.c.l.b16 %v533
    %v671 = vunpack.c.l.b16 %v534
    %v672 = vunpack.c.l.b16 %v535
    %v673 = vunpack.c.l.b16 %v536
    %v674 = vunpack.c.l.b16 %v537
    %v675 = vunpack.c.l.b16 %v538
    %v676 = vunpack.c.l.b16 %v539
    %v677 = vunpack.c.l.b16 %v540
    %v678 = vpack.c.b16 %v663, %v662
    %v679 = vpack.c.b16 %v665, %v664
    %v680 = vpack.c.b16 %v667, %v666
    %v681 = vpack.c.b16 %v669, %v668
    %v682 = vpack.c.b16 %v671, %v670
    %v683 = vpack.c.b16 %v673, %v672
    %v684 = vpack.c.b16 %v675, %v674
    %v685 = vpack.c.b16 %v677, %v676
    %694 = vmatprep.subr.bf16.mxu0 0
    %695 = vmatpush1.bf16.msra.mxu0 %v678
    %696 = vmatprep.subr.bf16.mxu0 0
    %697 = vmatpush1.bf16.msra.mxu0 %v679
    %698 = vmatprep.subr.bf16.mxu0 0
    %699 = vmatpush1.bf16.msra.mxu0 %v680
    %700 = vmatprep.subr.bf16.mxu0 0
    %701 = vmatpush1.bf16.msra.mxu0 %v681
    %702 = vmatprep.subr.bf16.mxu0 0
    %703 = vmatpush1.bf16.msra.mxu0 %v682
    %704 = vmatprep.subr.bf16.mxu0 0
    %705 = vmatpush1.bf16.msra.mxu0 %v683
    %706 = vmatprep.subr.bf16.mxu0 0
    %707 = vmatpush1.bf16.msra.mxu0 %v684
    %708 = vmatprep.subr.bf16.mxu0 0
    %709 = vmatpush1.bf16.msra.mxu0 %v685
    %710 = vmatprep.subr.bf16.mxu0 0
    %711 = vmatpush1.bf16.msra.mxu0 0
    %712 = vmatprep.subr.bf16.mxu0 0
    %713 = vmatpush1.bf16.msra.mxu0 0
    %714 = vmatprep.subr.bf16.mxu0 0
    %715 = vmatpush1.bf16.msra.mxu0 0
    %716 = vmatprep.subr.bf16.mxu0 0
    %717 = vmatpush1.bf16.msra.mxu0 0
    %718 = vmatprep.subr.bf16.mxu0 0
    %719 = vmatpush1.bf16.msra.mxu0 0
    %720 = vmatprep.subr.bf16.mxu0 0
    %721 = vmatpush1.bf16.msra.mxu0 0
    %722 = vmatprep.subr.bf16.mxu0 0
    %723 = vmatpush1.bf16.msra.mxu0 0
    %724 = vmatprep.subr.bf16.mxu0 0
    %725 = vmatpush1.bf16.msra.mxu0 0
    %726 = vmatprep.mubr.bf16.mxu0 0
    %727 = vmatmul.mubr.bf16.gmra.mrb[0].mxu0 %v524
    %v728 = vpop.f32.mrb[0].mxu0
    %v729 = vadd.f32 %v641, %v728
    %v730 = vpop.f32.mrb[0].mxu0
    %v731 = vpop.f32.mrb[0].mxu0
    %v732 = vpop.f32.mrb[0].mxu0
    %733 = vdwg.mxu0
    %v734 = vld [vmem:[%s7] sm:$0x1]
    %v736 = vlaneseq
    %v737 = vshrl.u32 %v736, 7
    %v738 = vsub.s32 0, %v737
    %v739 = vrot.slane %v734, %v738
    %v741 = vadd.f32 %v729, %v739
    %v742 = vmax.f32 %v741, 0.0
    %743 = vmatprep.subr.mxu0 0.0
    %744 = vmatpush1.msra.mxu0 %v742
    %745 = vmatprep.subr.mxu0 0.0
    %746 = vmatpush1.msra.mxu0 0.0
    %747 = vmatprep.subr.mxu0 0.0
    %748 = vmatpush1.msra.mxu0 0.0
    %749 = vmatprep.subr.mxu0 0.0
    %750 = vmatpush1.msra.mxu0 0.0
    %751 = vmatprep.subr.mxu0 0.0
    %752 = vmatpush1.msra.mxu0 0.0
    %753 = vmatprep.subr.mxu0 0.0
    %754 = vmatpush1.msra.mxu0 0.0
    %755 = vmatprep.subr.mxu0 0.0
    %756 = vmatpush1.msra.mxu0 0.0
    %757 = vmatprep.subr.mxu0 0.0
    %758 = vmatpush1.msra.mxu0 0.0
    %759 = vmatprep.subr.mxu0 0.0
    %760 = vmatpush1.msra.mxu0 0.0
    %761 = vmatprep.subr.mxu0 0.0
    %762 = vmatpush1.msra.mxu0 0.0
    %763 = vmatprep.subr.mxu0 0.0
    %764 = vmatpush1.msra.mxu0 0.0
    %765 = vmatprep.subr.mxu0 0.0
    %766 = vmatpush1.msra.mxu0 0.0
    %767 = vmatprep.subr.mxu0 0.0
    %768 = vmatpush1.msra.mxu0 0.0
    %769 = vmatprep.subr.mxu0 0.0
    %770 = vmatpush1.msra.mxu0 0.0
    %771 = vmatprep.subr.mxu0 0.0
    %772 = vmatpush1.msra.mxu0 0.0
    %773 = vmatprep.subr.mxu0 0.0
    %774 = vmatpush1.msra.mxu0 0.0
    %775 = vmatprep.subr.mxu0 0.0
    %776 = vmatpush1.msra.mxu0 0.0
    %777 = vmatprep.subr.mxu0 0.0
    %778 = vmatpush1.msra.mxu0 0.0
    %779 = vmatprep.subr.mxu0 0.0
    %780 = vmatpush1.msra.mxu0 0.0
    %781 = vmatprep.subr.mxu0 0.0
    %782 = vmatpush1.msra.mxu0 0.0
    %783 = vmatprep.subr.mxu0 0.0
    %784 = vmatpush1.msra.mxu0 0.0
    %785 = vmatprep.subr.mxu0 0.0
    %786 = vmatpush1.msra.mxu0 0.0
    %787 = vmatprep.subr.mxu0 0.0
    %788 = vmatpush1.msra.mxu0 0.0
    %789 = vmatprep.subr.mxu0 0.0
    %790 = vmatpush1.msra.mxu0 0.0
    %791 = vmatprep.subr.mxu0 0.0
    %792 = vmatpush1.msra.mxu0 0.0
    %793 = vmatprep.subr.mxu0 0.0
    %794 = vmatpush1.msra.mxu0 0.0
    %795 = vmatprep.subr.mxu0 0.0
    %796 = vmatpush1.msra.mxu0 0.0
    %797 = vmatprep.subr.mxu0 0.0
    %798 = vmatpush1.msra.mxu0 0.0
    %799 = vmatprep.subr.mxu0 0.0
    %800 = vmatpush1.msra.mxu0 0.0
    %801 = vmatprep.subr.mxu0 0.0
    %802 = vmatpush1.msra.mxu0 0.0
    %803 = vmatprep.subr.mxu0 0.0
    %804 = vmatpush1.msra.mxu0 0.0
    %805 = vmatprep.subr.mxu0 0.0
    %806 = vmatpush1.msra.mxu0 0.0
    %807 = vmatprep.mubr.f32.mxu0 0.0
    %808 = vmatmul.mubr.f32.gmra.mrb[0].mxu0 %v163
    %v809 = vpop.f32.mrb[0].mxu0
    %v810 = vadd.f32 0.0, %v809
    %v811 = vpop.f32.mrb[0].mxu0
    %812 = vdwg.mxu0
    %v813 = vpack.c.bf16 %v810, %v810
    %v814 = vld [vmem:[#allocation14] sm:$0xf]
    %v815 = vld [vmem:[#allocation14 + $0x4] sm:$0xf]
    %v816 = vld [vmem:[#allocation14 + $0x8] sm:$0xf]
    %v817 = vld [vmem:[#allocation14 + $0xc] sm:$0xf]
    %v818 = vld [vmem:[#allocation14 + $0x10] sm:$0xf]
    %v819 = vld [vmem:[#allocation14 + $0x14] sm:$0xf]
    %v820 = vld [vmem:[#allocation14 + $0x18] sm:$0xf]
    %v821 = vld [vmem:[#allocation14 + $0x1c] sm:$0xf]
    %v822 = vld [vmem:[#allocation14 + $0x20] sm:$0xf]
    %v823 = vld [vmem:[#allocation14 + $0x24] sm:$0xf]
    %v824 = vld [vmem:[#allocation14 + $0x28] sm:$0xf]
    %v825 = vld [vmem:[#allocation14 + $0x2c] sm:$0xf]
    %v826 = vld [vmem:[#allocation14 + $0x30] sm:$0xf]
    %v827 = vld [vmem:[#allocation14 + $0x34] sm:$0xf]
    %v828 = vld [vmem:[#allocation14 + $0x38] sm:$0xf]
    %v829 = vld [vmem:[#allocation14 + $0x3c] sm:$0xf]
    %v830 = vpack.c.bf16 %v742, %v742
    %v831 = vld [vmem:[#allocation16] sm:$0xf]
    %v832 = vld [vmem:[#allocation16 + $0x4] sm:$0xf]
    %v833 = vld [vmem:[#allocation16 + $0x8] sm:$0xf]
    %v834 = vld [vmem:[#allocation16 + $0xc] sm:$0xf]
    %v835 = vld [vmem:[#allocation16 + $0x10] sm:$0xf]
    %v836 = vld [vmem:[#allocation16 + $0x14] sm:$0xf]
    %v837 = vld [vmem:[#allocation16 + $0x18] sm:$0xf]
    %v838 = vld [vmem:[#allocation16 + $0x1c] sm:$0xf]
    %v839 = vld [vmem:[#allocation16 + $0x20] sm:$0xf]
    %v840 = vld [vmem:[#allocation16 + $0x24] sm:$0xf]
    %v841 = vld [vmem:[#allocation16 + $0x28] sm:$0xf]
    %v842 = vld [vmem:[#allocation16 + $0x2c] sm:$0xf]
    %v843 = vld [vmem:[#allocation16 + $0x30] sm:$0xf]
    %v844 = vld [vmem:[#allocation16 + $0x34] sm:$0xf]
    %v845 = vld [vmem:[#allocation16 + $0x38] sm:$0xf]
    %v846 = vld [vmem:[#allocation16 + $0x3c] sm:$0xf]
    %v863 = vunpack.c.l.b16 %v831
    %v864 = vunpack.c.l.b16 %v832
    %v865 = vunpack.c.l.b16 %v833
    %v866 = vunpack.c.l.b16 %v834
    %v867 = vunpack.c.l.b16 %v835
    %v868 = vunpack.c.l.b16 %v836
    %v869 = vunpack.c.l.b16 %v837
    %v870 = vunpack.c.l.b16 %v838
    %v871 = vunpack.c.l.b16 %v839
    %v872 = vunpack.c.l.b16 %v840
    %v873 = vunpack.c.l.b16 %v841
    %v874 = vunpack.c.l.b16 %v842
    %v875 = vunpack.c.l.b16 %v843
    %v876 = vunpack.c.l.b16 %v844
    %v877 = vunpack.c.l.b16 %v845
    %v878 = vunpack.c.l.b16 %v846
    %v879 = vpack.c.b16 %v864, %v863
    %v880 = vpack.c.b16 %v866, %v865
    %v881 = vpack.c.b16 %v868, %v867
    %v882 = vpack.c.b16 %v870, %v869
    %v883 = vpack.c.b16 %v872, %v871
    %v884 = vpack.c.b16 %v874, %v873
    %v885 = vpack.c.b16 %v876, %v875
    %v886 = vpack.c.b16 %v878, %v877
    %895 = vmatprep.subr.bf16.mxu0 0
    %896 = vmatpush1.bf16.msra.mxu0 %v879
    %897 = vmatprep.subr.bf16.mxu0 0
    %898 = vmatpush1.bf16.msra.mxu0 %v880
    %899 = vmatprep.subr.bf16.mxu0 0
    %900 = vmatpush1.bf16.msra.mxu0 %v881
    %901 = vmatprep.subr.bf16.mxu0 0
    %902 = vmatpush1.bf16.msra.mxu0 %v882
    %903 = vmatprep.subr.bf16.mxu0 0
    %904 = vmatpush1.bf16.msra.mxu0 %v883
    %905 = vmatprep.subr.bf16.mxu0 0
    %906 = vmatpush1.bf16.msra.mxu0 %v884
    %907 = vmatprep.subr.bf16.mxu0 0
    %908 = vmatpush1.bf16.msra.mxu0 %v885
    %909 = vmatprep.subr.bf16.mxu0 0
    %910 = vmatpush1.bf16.msra.mxu0 %v886
    %911 = vmatprep.subr.bf16.mxu0 0
    %912 = vmatpush1.bf16.msra.mxu0 0
    %913 = vmatprep.subr.bf16.mxu0 0
    %914 = vmatpush1.bf16.msra.mxu0 0
    %915 = vmatprep.subr.bf16.mxu0 0
    %916 = vmatpush1.bf16.msra.mxu0 0
    %917 = vmatprep.subr.bf16.mxu0 0
    %918 = vmatpush1.bf16.msra.mxu0 0
    %919 = vmatprep.subr.bf16.mxu0 0
    %920 = vmatpush1.bf16.msra.mxu0 0
    %921 = vmatprep.subr.bf16.mxu0 0
    %922 = vmatpush1.bf16.msra.mxu0 0
    %923 = vmatprep.subr.bf16.mxu0 0
    %924 = vmatpush1.bf16.msra.mxu0 0
    %925 = vmatprep.subr.bf16.mxu0 0
    %926 = vmatpush1.bf16.msra.mxu0 0
    %927 = vmatprep.mubr.bf16.mxu0 0
    %928 = vmatmul.mubr.bf16.gmra.mrb[0].mxu0 %v830
    %v929 = vpop.f32.mrb[0].mxu0
    %v930 = vadd.f32 0.0, %v929
    %v931 = vpop.f32.mrb[0].mxu0
    %v932 = vpop.f32.mrb[0].mxu0
    %v933 = vpop.f32.mrb[0].mxu0
    %934 = vdwg.mxu0
    %v951 = vunpack.c.l.b16 %v814
    %v952 = vunpack.c.l.b16 %v815
    %v953 = vunpack.c.l.b16 %v816
    %v954 = vunpack.c.l.b16 %v817
    %v955 = vunpack.c.l.b16 %v818
    %v956 = vunpack.c.l.b16 %v819
    %v957 = vunpack.c.l.b16 %v820
    %v958 = vunpack.c.l.b16 %v821
    %v959 = vunpack.c.l.b16 %v822
    %v960 = vunpack.c.l.b16 %v823
    %v961 = vunpack.c.l.b16 %v824
    %v962 = vunpack.c.l.b16 %v825
    %v963 = vunpack.c.l.b16 %v826
    %v964 = vunpack.c.l.b16 %v827
    %v965 = vunpack.c.l.b16 %v828
    %v966 = vunpack.c.l.b16 %v829
    %v967 = vpack.c.b16 %v952, %v951
    %v968 = vpack.c.b16 %v954, %v953
    %v969 = vpack.c.b16 %v956, %v955
    %v970 = vpack.c.b16 %v958, %v957
    %v971 = vpack.c.b16 %v960, %v959
    %v972 = vpack.c.b16 %v962, %v961
    %v973 = vpack.c.b16 %v964, %v963
    %v974 = vpack.c.b16 %v966, %v965
    %983 = vmatprep.subr.bf16.mxu0 0
    %984 = vmatpush1.bf16.msra.mxu0 %v967
    %985 = vmatprep.subr.bf16.mxu0 0
    %986 = vmatpush1.bf16.msra.mxu0 %v968
    %987 = vmatprep.subr.bf16.mxu0 0
    %988 = vmatpush1.bf16.msra.mxu0 %v969
    %989 = vmatprep.subr.bf16.mxu0 0
    %990 = vmatpush1.bf16.msra.mxu0 %v970
    %991 = vmatprep.subr.bf16.mxu0 0
    %992 = vmatpush1.bf16.msra.mxu0 %v971
    %993 = vmatprep.subr.bf16.mxu0 0
    %994 = vmatpush1.bf16.msra.mxu0 %v972
    %995 = vmatprep.subr.bf16.mxu0 0
    %996 = vmatpush1.bf16.msra.mxu0 %v973
    %997 = vmatprep.subr.bf16.mxu0 0
    %998 = vmatpush1.bf16.msra.mxu0 %v974
    %999 = vmatprep.subr.bf16.mxu0 0
    %1000 = vmatpush1.bf16.msra.mxu0 0
    %1001 = vmatprep.subr.bf16.mxu0 0
    %1002 = vmatpush1.bf16.msra.mxu0 0
    %1003 = vmatprep.subr.bf16.mxu0 0
    %1004 = vmatpush1.bf16.msra.mxu0 0
    %1005 = vmatprep.subr.bf16.mxu0 0
    %1006 = vmatpush1.bf16.msra.mxu0 0
    %1007 = vmatprep.subr.bf16.mxu0 0
    %1008 = vmatpush1.bf16.msra.mxu0 0
    %1009 = vmatprep.subr.bf16.mxu0 0
    %1010 = vmatpush1.bf16.msra.mxu0 0
    %1011 = vmatprep.subr.bf16.mxu0 0
    %1012 = vmatpush1.bf16.msra.mxu0 0
    %1013 = vmatprep.subr.bf16.mxu0 0
    %1014 = vmatpush1.bf16.msra.mxu0 0
    %1015 = vmatprep.mubr.bf16.mxu0 0
    %1016 = vmatmul.mubr.bf16.gmra.mrb[0].mxu0 %v813
    %v1017 = vpop.f32.mrb[0].mxu0
    %v1018 = vadd.f32 %v930, %v1017
    %v1019 = vpop.f32.mrb[0].mxu0
    %v1020 = vpop.f32.mrb[0].mxu0
    %v1021 = vpop.f32.mrb[0].mxu0
    %1022 = vdwg.mxu0
    %v1023 = vld [vmem:[%s10] sm:$0x1]
    %v1025 = vlaneseq
    %v1026 = vshrl.u32 %v1025, 7
    %v1027 = vsub.s32 0, %v1026
    %v1028 = vrot.slane %v1023, %v1027
    %v1030 = vadd.f32 %v1018, %v1028
    %v1031 = vld [vmem:[#allocation7] sm:$0xff]
    %v1033 = vsel %vm161, %v1031, 0
    %1035 = vmatprep.subr.mxu0 0.0
    %1036 = vmatpush1.msra.mxu0 %v1030
    %1037 = vmatprep.subr.mxu0 0.0
    %1038 = vmatpush1.msra.mxu0 0.0
    %1039 = vmatprep.subr.mxu0 0.0
    %1040 = vmatpush1.msra.mxu0 0.0
    %1041 = vmatprep.subr.mxu0 0.0
    %1042 = vmatpush1.msra.mxu0 0.0
    %1043 = vmatprep.subr.mxu0 0.0
    %1044 = vmatpush1.msra.mxu0 0.0
    %1045 = vmatprep.subr.mxu0 0.0
    %1046 = vmatpush1.msra.mxu0 0.0
    %1047 = vmatprep.subr.mxu0 0.0
    %1048 = vmatpush1.msra.mxu0 0.0
    %1049 = vmatprep.subr.mxu0 0.0
    %1050 = vmatpush1.msra.mxu0 0.0
    %1051 = vmatprep.subr.mxu0 0.0
    %1052 = vmatpush1.msra.mxu0 0.0
    %1053 = vmatprep.subr.mxu0 0.0
    %1054 = vmatpush1.msra.mxu0 0.0
    %1055 = vmatprep.subr.mxu0 0.0
    %1056 = vmatpush1.msra.mxu0 0.0
    %1057 = vmatprep.subr.mxu0 0.0
    %1058 = vmatpush1.msra.mxu0 0.0
    %1059 = vmatprep.subr.mxu0 0.0
    %1060 = vmatpush1.msra.mxu0 0.0
    %1061 = vmatprep.subr.mxu0 0.0
    %1062 = vmatpush1.msra.mxu0 0.0
    %1063 = vmatprep.subr.mxu0 0.0
    %1064 = vmatpush1.msra.mxu0 0.0
    %1065 = vmatprep.subr.mxu0 0.0
    %1066 = vmatpush1.msra.mxu0 0.0
    %1067 = vmatprep.subr.mxu0 0.0
    %1068 = vmatpush1.msra.mxu0 0.0
    %1069 = vmatprep.subr.mxu0 0.0
    %1070 = vmatpush1.msra.mxu0 0.0
    %1071 = vmatprep.subr.mxu0 0.0
    %1072 = vmatpush1.msra.mxu0 0.0
    %1073 = vmatprep.subr.mxu0 0.0
    %1074 = vmatpush1.msra.mxu0 0.0
    %1075 = vmatprep.subr.mxu0 0.0
    %1076 = vmatpush1.msra.mxu0 0.0
    %1077 = vmatprep.subr.mxu0 0.0
    %1078 = vmatpush1.msra.mxu0 0.0
    %1079 = vmatprep.subr.mxu0 0.0
    %1080 = vmatpush1.msra.mxu0 0.0
    %1081 = vmatprep.subr.mxu0 0.0
    %1082 = vmatpush1.msra.mxu0 0.0
    %1083 = vmatprep.subr.mxu0 0.0
    %1084 = vmatpush1.msra.mxu0 0.0
    %1085 = vmatprep.subr.mxu0 0.0
    %1086 = vmatpush1.msra.mxu0 0.0
    %1087 = vmatprep.subr.mxu0 0.0
    %1088 = vmatpush1.msra.mxu0 0.0
    %1089 = vmatprep.subr.mxu0 0.0
    %1090 = vmatpush1.msra.mxu0 0.0
    %1091 = vmatprep.subr.mxu0 0.0
    %1092 = vmatpush1.msra.mxu0 0.0
    %1093 = vmatprep.subr.mxu0 0.0
    %1094 = vmatpush1.msra.mxu0 0.0
    %1095 = vmatprep.subr.mxu0 0.0
    %1096 = vmatpush1.msra.mxu0 0.0
    %1097 = vmatprep.subr.mxu0 0.0
    %1098 = vmatpush1.msra.mxu0 0.0
    %1099 = vmatprep.mubr.f32.mxu0 0.0
    %1100 = vmatmul.mubr.f32.gmra.mrb[0].mxu0 %v1033
    %v1101 = vpop.f32.mrb[0].mxu0
    %v1102 = vadd.f32 0.0, %v1101
    %v1103 = vpop.f32.mrb[0].mxu0
    %1104 = vdwg.mxu0
    %1105 = vst [vmem:[#allocation17] sm:$0xff] %v1102
    // Predicated region
    $region86: #{tpu_custom_call.1} parent=1 // pred_check
      _
    $region87: #{tpu_custom_call.1} parent=1 // pred_check_branch
      %1107 = sbr.rel (0) target = $region89
    $region88: #{tpu_custom_call.1} parent=1 // pred_region
      %s1109 = ssub.s32 128, 128
      %1110 = vsyncadd [#allocation4], %s1109
      %s1112 = sshll.u32 [#allocation17], 4
      %s1113 = int_to_ptr.vmem [resolvable:$true] %s1112
      %1115 = dma.vmem_to_hbm [thread:$0]  %s1113, 128, %s12, [#allocation4]
    $region89: #{tpu_custom_call.1} parent=1 // pred_fallthru
      _
    // Predicated region
    $region90: #{tpu_custom_call.1} parent=1 // pred_check
      _
    $region91: #{tpu_custom_call.1} parent=1 // pred_check_branch
      %1117 = sbr.rel (0) target = $region93
    $region92: #{tpu_custom_call.1} parent=1 // pred_region
      %1118 = dma.done [#allocation4], 128
    $region93: #{tpu_custom_call.1} parent=1 // pred_fallthru
      _
    %1119 = vsyncpa [#allocation3], 1
    %1120 = vsyncpa [#allocation6], 1
    %1121 = vsyncpa [#allocation9], 1
    %1122 = vsyncpa [#allocation12], 1
    %1123 = vsyncpa [#allocation15], 1
    %1124 = vsyncpa [#allocation4], 1

</llo_original>
